<compile_context>
chip_gen: v5e
topology: v5e:2x2
jax: 0.10.0
libtpu: 0.0.40
codegen_flags: <defaults>
</compile_context>

<pallas_src>
import functools
import math

import jax
import jax.numpy as jnp
from jax.experimental import pallas as pl
from jax.experimental.pallas import tpu as pltpu


_NEG_LOG_1E4 = -math.log(1e-4)  # -log of the clamped one-hot "off" value


def _sce_kernel(pred_ref, labels_ref, out_ref, acc_ref, *,
                alpha, beta, n_total, tile_n):
    i = pl.program_id(0)
    n_tiles = pl.num_programs(0)

    @pl.when(i == 0)
    def _init():
        acc_ref[0] = jnp.float32(0.0)
        acc_ref[1] = jnp.float32(0.0)

    logits_raw = pred_ref[...].astype(jnp.float32)          # (tile_n, C)
    labels = labels_ref[...]                                 # (tile_n, 1) int32
    tn, c = logits_raw.shape

    # Mask rows past the true batch size (last partial tile).  Zeroing the
    # logits keeps every downstream op finite for the padded rows.
    row_ids = i * tile_n + jax.lax.broadcasted_iota(jnp.int32, (tn, 1), 0)
    row_valid = row_ids < n_total                            # (tile_n, 1) bool
    logits = jnp.where(row_valid, logits_raw, 0.0)

    # One-hot via iota comparison (stays in VPU, no gather).
    cls_ids = jax.lax.broadcasted_iota(jnp.int32, (tn, c), 1)
    onehot = cls_ids == labels                               # (tile_n, C)

    # --- stable softmax pieces ---
    m = jnp.max(logits, axis=-1, keepdims=True)              # (tile_n, 1)
    shifted = logits - m
    expv = jnp.exp(shifted)
    denom = jnp.sum(expv, axis=-1, keepdims=True)            # (tile_n, 1)
    inv_denom = pl.reciprocal(denom, approx=False)           # EUP, per-row
    lse = jnp.log(denom)                                     # per-row

    # Logit (shifted) at the label position.
    shifted_at_label = jnp.sum(jnp.where(onehot, shifted, 0.0),
                               axis=-1, keepdims=True)       # (tile_n, 1)

    # --- cross entropy (matches nn.CrossEntropyLoss, mean reduction) ---
    ce_i = lse - shifted_at_label                            # (tile_n, 1)

    # --- reverse cross entropy, algebraically simplified ---
    #   rce_i = -log(1e-4) * (sum_j clip(p_ij) - clip(p_i,label))
    p = jnp.clip(expv * inv_denom, 1e-7, 1.0)                # (tile_n, C)
    p_sum = jnp.sum(p, axis=-1, keepdims=True)               # (tile_n, 1)
    p_label = jnp.clip(jnp.exp(shifted_at_label) * inv_denom, 1e-7, 1.0)
    rce_i = jnp.float32(_NEG_LOG_1E4) * (p_sum - p_label)    # (tile_n, 1)

    # Accumulate masked per-tile partial sums into SMEM scratch.
    acc_ref[0] = acc_ref[0] + jnp.sum(jnp.where(row_valid, ce_i, 0.0))
    acc_ref[1] = acc_ref[1] + jnp.sum(jnp.where(row_valid, rce_i, 0.0))

    @pl.when(i == n_tiles - 1)
    def _finalize():
        inv_n = jnp.float32(1.0 / n_total)
        out_ref[0, 0] = (jnp.float32(alpha) * acc_ref[0]
                         + jnp.float32(beta) * acc_ref[1]) * inv_n


def sce_loss(pred, labels, *, alpha, beta, num_classes, tile_n=None):
    """pred: (N, C) logits (any float dtype); labels: (N,) ints. Returns f32 scalar."""
    n, c = pred.shape
    assert c == num_classes
    labels2d = labels.astype(jnp.int32).reshape(n, 1)

    itemsize = jnp.dtype(pred.dtype).itemsize
    if tile_n is None:
        # Keep each input block ~<= 2 MiB so double-buffering + f32 temporaries
        # fit comfortably under v5e's 16 MiB scoped VMEM (and v7x's 64 MiB phys).
        bytes_per_row = max(1, c * itemsize)
        cap = max(8, min(2048, (2 * 1024 * 1024) // bytes_per_row))
        cap = max(8, (cap // 8) * 8)
        tile_n = n if n <= cap else cap
    n_tiles = pl.cdiv(n, tile_n)

    kernel = functools.partial(
        _sce_kernel, alpha=float(alpha), beta=float(beta),
        n_total=n, tile_n=tile_n)

    cost = pl.CostEstimate(
        flops=10 * n * c,
        transcendentals=n * c + 3 * n,
        bytes_accessed=n * c * itemsize + n * 4 + 4,
    )

    out = pl.pallas_call(
        kernel,
        out_shape=jax.ShapeDtypeStruct((1, 1), jnp.float32),
        grid_spec=pltpu.PrefetchScalarGridSpec(
            num_scalar_prefetch=0,
            grid=(n_tiles,),
            in_specs=[
                pl.BlockSpec((tile_n, c), lambda i: (i, 0)),
                pl.BlockSpec((tile_n, 1), lambda i: (i, 0)),
            ],
            out_specs=pl.BlockSpec((1, 1), lambda i: (0, 0),
                                   memory_space=pltpu.SMEM),
            scratch_shapes=[pltpu.SMEM((2,), jnp.float32)],
        ),
        compiler_params=pltpu.CompilerParams(
            dimension_semantics=("arbitrary",),
        ),
        cost_estimate=cost,
    )(pred, labels2d)
    return out[0, 0]


def _sce_loss_ref(pred, labels, *, alpha, beta, num_classes):
    # Pure-JAX reference mirroring the PyTorch module, for a sanity check.
    logp = jax.nn.log_softmax(pred.astype(jnp.float32), axis=1)
    ce = -jnp.mean(jnp.take_along_axis(logp, labels[:, None], axis=1))
    p = jnp.clip(jax.nn.softmax(pred.astype(jnp.float32), axis=1), 1e-7, 1.0)
    oh = jnp.clip(jax.nn.one_hot(labels, num_classes, dtype=jnp.float32),
                  1e-4, 1.0)
    rce = -jnp.sum(p * jnp.log(oh), axis=1)
    return alpha * ce + beta * jnp.mean(rce)


if __name__ == "__main__":
    key = jax.random.PRNGKey(0)
    k_pred, k_lab = jax.random.split(key)

    N, NUM_CLASSES = 8, 10
    ALPHA, BETA = 0.1, 1.0

    pred = jax.random.normal(k_pred, (N, NUM_CLASSES), dtype=jnp.float32)
    labels = jax.random.randint(k_lab, (N,), 0, NUM_CLASSES, dtype=jnp.int32)

    loss = sce_loss(pred, labels, alpha=ALPHA, beta=BETA,
                    num_classes=NUM_CLASSES)
    loss = jax.block_until_ready(loss)

    ref = _sce_loss_ref(pred, labels, alpha=ALPHA, beta=BETA,
                        num_classes=NUM_CLASSES)
    assert jnp.allclose(loss, ref, rtol=1e-5, atol=1e-5), (loss, ref)

    print("KERNEL_OK")
</pallas_src>

<mosaic_0001>
module attributes {stable_mosaic.version = 11 : i64} {
  func.func @_sce_kernel(%arg0: i32, %arg1: memref<8x10xf32, #tpu.memory_space<vmem>>, %arg2: memref<8x1xi32, #tpu.memory_space<vmem>>, %arg3: memref<1x1xf32, #tpu.memory_space<smem>>, %arg4: memref<2xf32, #tpu.memory_space<smem>>) attributes {dimension_semantics = [#tpu.dimension_semantics<arbitrary>], iteration_bounds = array<i64: 1>, scalar_prefetch = 0 : i64, scratch_operands = 1 : i64, tpu.core_type = #tpu.core_type<tc>, window_params = [{transform_indices = @transform_0, window_bounds = array<i64: 8, 10>}, {transform_indices = @transform_1, window_bounds = array<i64: 8, 1>}, {transform_indices = @transform_2, window_bounds = array<i64: 1, 1>}]} {
    %c0_i32 = arith.constant 0 : i32
    %0 = arith.cmpi eq, %arg0, %c0_i32 : i32
    %1 = arith.extui %0 : i1 to i32
    %c0_i32_0 = arith.constant 0 : i32
    %2 = arith.cmpi ne, %1, %c0_i32_0 : i32
    scf.if %2 {
      %cst_24 = arith.constant 0.000000e+00 : f32
      %c0_25 = arith.constant 0 : index
      %70 = memref.load %arg4[%c0_25] : memref<2xf32, #tpu.memory_space<smem>>
      memref.store %cst_24, %arg4[%c0_25] : memref<2xf32, #tpu.memory_space<smem>>
      %cst_26 = arith.constant 0.000000e+00 : f32
      %c1_27 = arith.constant 1 : index
      %71 = memref.load %arg4[%c1_27] : memref<2xf32, #tpu.memory_space<smem>>
      memref.store %cst_26, %arg4[%c1_27] : memref<2xf32, #tpu.memory_space<smem>>
    } else {
    }
    %c0 = arith.constant 0 : index
    %c0_1 = arith.constant 0 : index
    %3 = vector.load %arg1[%c0, %c0_1] : memref<8x10xf32, #tpu.memory_space<vmem>>, vector<8x10xf32>
    %c0_2 = arith.constant 0 : index
    %c0_3 = arith.constant 0 : index
    %4 = vector.load %arg2[%c0_2, %c0_3] : memref<8x1xi32, #tpu.memory_space<vmem>>, vector<8x1xi32>
    %c8_i32 = arith.constant 8 : i32
    %5 = arith.muli %arg0, %c8_i32 : i32
    %6 = tpu.iota {dimensions = array<i32: 0>} : vector<8x1xi32>
    %7 = vector.broadcast %5 : i32 to vector<8x1xi32>
    %8 = arith.addi %7, %6 : vector<8x1xi32>
    %c8_i32_4 = arith.constant 8 : i32
    %9 = vector.broadcast %c8_i32_4 : i32 to vector<8x1xi32>
    %10 = arith.cmpi slt, %8, %9 : vector<8x1xi32>
    %cst = arith.constant 0.000000e+00 : f32
    %11 = vector.shape_cast %10 : vector<8x1xi1> to vector<8x1xi1>
    %12 = vector.broadcast %11 : vector<8x1xi1> to vector<8x10xi1>
    %13 = vector.broadcast %cst : f32 to vector<8x10xf32>
    %14 = arith.select %12, %3, %13 : vector<8x10xi1>, vector<8x10xf32>
    %15 = tpu.iota {dimensions = array<i32: 1>} : vector<8x10xi32>
    %16 = vector.broadcast %4 : vector<8x1xi32> to vector<8x10xi32>
    %17 = arith.cmpi eq, %15, %16 : vector<8x10xi32>
    %cst_5 = arith.constant dense<0xFF800000> : vector<8xf32>
    %18 = vector.multi_reduction <maximumf>, %14, %cst_5 [1] : vector<8x10xf32> to vector<8xf32>
    %19 = vector.shape_cast %18 : vector<8xf32> to vector<8x1xf32>
    %20 = vector.broadcast %19 : vector<8x1xf32> to vector<8x10xf32>
    %21 = arith.subf %14, %20 : vector<8x10xf32>
    %22 = math.exp %21 : vector<8x10xf32>
    %cst_6 = arith.constant dense<0.000000e+00> : vector<8xf32>
    %23 = vector.multi_reduction <add>, %22, %cst_6 [1] : vector<8x10xf32> to vector<8xf32>
    %24 = vector.shape_cast %23 : vector<8xf32> to vector<8x1xf32>
    %25 = tpu.reciprocal %24 : vector<8x1xf32> -> vector<8x1xf32>
    %26 = math.log %24 : vector<8x1xf32>
    %cst_7 = arith.constant 0.000000e+00 : f32
    %27 = vector.broadcast %cst_7 : f32 to vector<8x10xf32>
    %28 = arith.select %17, %21, %27 : vector<8x10xi1>, vector<8x10xf32>
    %cst_8 = arith.constant dense<0.000000e+00> : vector<8xf32>
    %29 = vector.multi_reduction <add>, %28, %cst_8 [1] : vector<8x10xf32> to vector<8xf32>
    %30 = vector.shape_cast %29 : vector<8xf32> to vector<8x1xf32>
    %31 = arith.subf %26, %30 : vector<8x1xf32>
    %32 = vector.broadcast %25 : vector<8x1xf32> to vector<8x10xf32>
    %33 = arith.mulf %22, %32 : vector<8x10xf32>
    %cst_9 = arith.constant 1.000000e-07 : f32
    %cst_10 = arith.constant 1.000000e+00 : f32
    %34 = vector.broadcast %cst_9 : f32 to vector<8x10xf32>
    %35 = arith.maximumf %34, %33 : vector<8x10xf32>
    %36 = vector.broadcast %cst_10 : f32 to vector<8x10xf32>
    %37 = arith.minimumf %36, %35 : vector<8x10xf32>
    %cst_11 = arith.constant dense<0.000000e+00> : vector<8xf32>
    %38 = vector.multi_reduction <add>, %37, %cst_11 [1] : vector<8x10xf32> to vector<8xf32>
    %39 = vector.shape_cast %38 : vector<8xf32> to vector<8x1xf32>
    %40 = math.exp %30 : vector<8x1xf32>
    %41 = arith.mulf %40, %25 : vector<8x1xf32>
    %cst_12 = arith.constant 1.000000e-07 : f32
    %cst_13 = arith.constant 1.000000e+00 : f32
    %42 = vector.broadcast %cst_12 : f32 to vector<8x1xf32>
    %43 = arith.maximumf %42, %41 : vector<8x1xf32>
    %44 = vector.broadcast %cst_13 : f32 to vector<8x1xf32>
    %45 = arith.minimumf %44, %43 : vector<8x1xf32>
    %46 = arith.subf %39, %45 : vector<8x1xf32>
    %cst_14 = arith.constant 9.21034049 : f32
    %47 = vector.broadcast %cst_14 : f32 to vector<8x1xf32>
    %48 = arith.mulf %47, %46 : vector<8x1xf32>
    %c0_15 = arith.constant 0 : index
    %49 = memref.load %arg4[%c0_15] : memref<2xf32, #tpu.memory_space<smem>>
    %cst_16 = arith.constant 0.000000e+00 : f32
    %50 = vector.broadcast %cst_16 : f32 to vector<8x1xf32>
    %51 = arith.select %10, %31, %50 : vector<8x1xi1>, vector<8x1xf32>
    %52 = vector.shape_cast %51 : vector<8x1xf32> to vector<1x8x1xf32>
    %cst_17 = arith.constant dense<0.000000e+00> : vector<1xf32>
    %53 = vector.multi_reduction <add>, %52, %cst_17 [1, 2] : vector<1x8x1xf32> to vector<1xf32>
    %54 = vector.shape_cast %53 : vector<1xf32> to vector<1x1x1xf32>
    %55 = vector.extract %54[0, 0, 0] : f32 from vector<1x1x1xf32>
    %56 = arith.addf %49, %55 : f32
    %c0_18 = arith.constant 0 : index
    %57 = memref.load %arg4[%c0_18] : memref<2xf32, #tpu.memory_space<smem>>
    memref.store %56, %arg4[%c0_18] : memref<2xf32, #tpu.memory_space<smem>>
    %c1 = arith.constant 1 : index
    %58 = memref.load %arg4[%c1] : memref<2xf32, #tpu.memory_space<smem>>
    %cst_19 = arith.constant 0.000000e+00 : f32
    %59 = vector.broadcast %cst_19 : f32 to vector<8x1xf32>
    %60 = arith.select %10, %48, %59 : vector<8x1xi1>, vector<8x1xf32>
    %61 = vector.shape_cast %60 : vector<8x1xf32> to vector<1x8x1xf32>
    %cst_20 = arith.constant dense<0.000000e+00> : vector<1xf32>
    %62 = vector.multi_reduction <add>, %61, %cst_20 [1, 2] : vector<1x8x1xf32> to vector<1xf32>
    %63 = vector.shape_cast %62 : vector<1xf32> to vector<1x1x1xf32>
    %64 = vector.extract %63[0, 0, 0] : f32 from vector<1x1x1xf32>
    %65 = arith.addf %58, %64 : f32
    %c1_21 = arith.constant 1 : index
    %66 = memref.load %arg4[%c1_21] : memref<2xf32, #tpu.memory_space<smem>>
    memref.store %65, %arg4[%c1_21] : memref<2xf32, #tpu.memory_space<smem>>
    %c0_i32_22 = arith.constant 0 : i32
    %67 = arith.cmpi eq, %arg0, %c0_i32_22 : i32
    %68 = arith.extui %67 : i1 to i32
    %c0_i32_23 = arith.constant 0 : i32
    %69 = arith.cmpi ne, %68, %c0_i32_23 : i32
    scf.if %69 {
      %c0_24 = arith.constant 0 : index
      %70 = memref.load %arg4[%c0_24] : memref<2xf32, #tpu.memory_space<smem>>
      %cst_25 = arith.constant 1.000000e-01 : f32
      %71 = arith.mulf %cst_25, %70 : f32
      %c1_26 = arith.constant 1 : index
      %72 = memref.load %arg4[%c1_26] : memref<2xf32, #tpu.memory_space<smem>>
      %cst_27 = arith.constant 1.000000e+00 : f32
      %73 = arith.mulf %cst_27, %72 : f32
      %74 = arith.addf %71, %73 : f32
      %cst_28 = arith.constant 1.250000e-01 : f32
      %75 = arith.mulf %74, %cst_28 : f32
      %c0_29 = arith.constant 0 : index
      %c0_30 = arith.constant 0 : index
      %76 = memref.load %arg3[%c0_29, %c0_30] : memref<1x1xf32, #tpu.memory_space<smem>>
      memref.store %75, %arg3[%c0_29, %c0_30] : memref<1x1xf32, #tpu.memory_space<smem>>
    } else {
    }
    return
  }
  func.func @transform_0(%arg0: i32) -> (i32, i32) {
    %c0_i32 = arith.constant 0 : i32
    %c0_i32_0 = arith.constant 0 : i32
    return %arg0, %c0_i32 : i32, i32
  }
  func.func @transform_1(%arg0: i32) -> (i32, i32) {
    %c0_i32 = arith.constant 0 : i32
    %c0_i32_0 = arith.constant 0 : i32
    return %arg0, %c0_i32 : i32, i32
  }
  func.func @transform_2(%arg0: i32) -> (i32, i32) {
    %c0_i32 = arith.constant 0 : i32
    %c0_i32_0 = arith.constant 0 : i32
    %c0_i32_1 = arith.constant 0 : i32
    return %c0_i32, %c0_i32_0 : i32, i32
  }
}

</mosaic_0001>

<llo_original>
// kernel: tpu_custom_call.1
$region0: #{tpu_custom_call.1}
  #allocation0 [shape = 'u32[]', space=smem, size = 0x4, offset = 0x4, fixed_abs, tag = 'smem constant byte address 0x4 - core index']
  #allocation1 [shape = 'u32[72,128]{1,0:T(1,128)}', space=vmem, size = 0x9000, scoped, tag = 'internal scratch']
  #allocation2 [shape = 'f32[2]{0:T(128)}', space=smem, size = 0x200, scoped, tag = 'scratch operand']
  %s0 = inlined_call_operand.vmem [shape: f32[8,10], index: 0, kind: input, shape index: {}]
  %s1 = inlined_call_operand.vmem [shape: s32[8,1], index: 1, kind: input, shape index: {}]
  %s2 = inlined_call_operand.hbm [shape: f32[1,1], index: 2, kind: output, shape index: {}]
  %s3 = sld [smem:[#allocation0]]
  $region26: #{tpu_custom_call.1} parent=0
    _
  %s5 = ssub.s32 1, %s3
  %s6 = scalar_select 0, %s5, %s3
  $region1: #{tpu_custom_call.1} parent=0
    #allocation3 [shape = 'u8[512]{0}', space=smem, size = 0x200, scoped, tag = 'output window, operand 0, single buffered']
    #allocation4 [shape = 's32[1]{0}', space=sflag, size = 0x4, scoped, tag = 'scoped memory for tpu_custom_call.1']
    %7 = vsyncpa [#allocation4], 0
    // Predicated region
    $region2: #{tpu_custom_call.1} parent=1 // pred_check
      _
    $region3: #{tpu_custom_call.1} parent=1 // pred_check_branch
      %9 = sbr.rel (0) target = $region5
    $region4: #{tpu_custom_call.1} parent=1 // pred_region
      _
    $region5: #{tpu_custom_call.1} parent=1 // pred_fallthru
      _
    // Predicated region
    $region6: #{tpu_custom_call.1} parent=1 // pred_check
      _
    $region7: #{tpu_custom_call.1} parent=1 // pred_check_branch
      %11 = sbr.rel (0) target = $region9
    $region8: #{tpu_custom_call.1} parent=1 // pred_region
      _
    $region9: #{tpu_custom_call.1} parent=1 // pred_fallthru
      _
    %p12 = scmp.eq.s32.totalorder 0, 0
    // Predicated region
    $region10: #{tpu_custom_call.1} parent=1 // pred_check
      %p13 = pneg %p12
    $region11: #{tpu_custom_call.1} parent=1 // pred_check_branch
      %15 = sbr.rel (%p13) target = $region13
    $region12: #{tpu_custom_call.1} parent=1 // pred_region
      %s16 = scalar_lea.smem [#allocation2], 0
      %17 = sst [smem:[%s16]] 0.0
      %s18 = scalar_lea.smem [#allocation2], 1
      %19 = sst [smem:[%s18]] 0.0
    $region13: #{tpu_custom_call.1} parent=1 // pred_fallthru
      _
    %v20 = vld [vmem:[%s0] sm:$0xff]
    %v21 = vld [vmem:[%s1] sm:$0xff]
    %s22 = smul.u32 0, 8
    %v23 = vlaneseq
    %v24 = vshrl.u32 %v23, 7
    %v25 = vstv %s22
    %v26 = vadd.s32 %v25, %v24
    %vm27 = vcmp.lt.s32.totalorder %v26, 8
    %v28 = vsel %vm27, 1, 0
    %vm29 = vcmp.eq.s32.totalorder %v28, 1
    %v30 = vsel %vm29, %v20, 0.0
    %v31 = vlaneseq
    %v32 = vand.u32 %v31, 127
    %33 = vset.pattern.permute.xlu0 0
    %34 = vperm.xlu0 %33, %v21
    %v35 = vpop.permute.xlu0 %34
    %vm36 = vcmp.eq.s32.totalorder %v32, %v35
    %vm37 = vcmask 80896
    %v38 = vsel %vm37, %v30, -inf
    %39 = vmax.xlane.f32.xlu0 %v38
    %v40 = vpop.xlane.xlu0 %39
    %v41 = vsub.f32 %v30, %v40
    %v42 = vmul.f32 %v41, 1.442695
    %v43 = vpow.pop %v42
    %v44 = vsel %vm37, %v43, 0.0
    %45 = vadd.xlane.f32.xlu0 %v44
    %v46 = vpop.xlane.xlu0 %45
    %v47 = vrcp.pop %v46
    %v48 = vmul.f32 %v46, %v47
    %v49 = vsub.f32 1.0, %v48
    %v50 = vmul.f32 %v47, %v49
    %v51 = vadd.f32 %v47, %v50
    %vm52 = vweird.f32 %v46
    %vm53 = vweird.f32 %v47
    %vm54 = vmor %vm52, %vm53
    %v55 = vsel %vm54, %v47, %v51
    %v56 = vand.u32 2147483647, %v46
    %vm57 = vcmp.eq.f32.partialorder %v56, 8.507059e+37
    %v58 = vand.u32 %v46, 2147483648
    %v59 = vor.u32 1.1754944e-38, %v58
    %v60 = vsel %vm57, %v59, %v55
    %v61 = vlog2.pop %v46
    %v62 = vmul.f32 %v61, 0.6931472
    %v63 = vsel %vm36, %v41, 0.0
    %v64 = vsel %vm37, %v63, 0.0
    %65 = vadd.xlane.f32.xlu0 %v64
    %v66 = vpop.xlane.xlu0 %65
    %v67 = vsub.f32 %v62, %v66
    %v68 = vmul.f32 %v43, %v60
    %v69 = vmax.f32 %v68, 1e-07
    %v70 = vmin.f32 %v69, 1.0
    %v71 = vsel %vm37, %v70, 0.0
    %72 = vadd.xlane.f32.xlu0 %v71
    %v73 = vpop.xlane.xlu0 %72
    %v74 = vmul.f32 %v66, 1.442695
    %v75 = vpow.pop %v74
    %v76 = vmul.f32 %v75, %v60
    %v77 = vmax.f32 %v76, 1e-07
    %v78 = vmin.f32 %v77, 1.0
    %v79 = vsub.f32 %v73, %v78
    %v80 = vmul.f32 %v79, 9.2103405
    %s81 = sld [smem:[#allocation2]]
    %v82 = vsel %vm27, %v67, 0.0
    %vm83 = vcmask 7168
    %v84 = vsel %vm83, %v82, 0.0
    %85 = vadd.xlane.f32.xlu0 %v84
    %v86 = vpop.xlane.xlu0 %85
    %v87 = vrot.slane %v86, 4
    %v88 = vadd.f32 %v86, %v87
    %v89 = vrot.slane %v88, 2
    %v90 = vadd.f32 %v88, %v89
    %v91 = vrot.slane %v90, 1
    %v92 = vadd.f32 %v90, %v91
    %s93 = vtos %v92
    %s94 = sadd.f32 %s81, %s93
    %s95 = scalar_lea.smem [#allocation2], 0
    %96 = sst [smem:[%s95]] %s94
    %s97 = sld [smem:[#allocation2 + $0x1]]
    %v98 = vsel %vm27, %v80, 0.0
    %v99 = vsel %vm83, %v98, 0.0
    %100 = vadd.xlane.f32.xlu0 %v99
    %v101 = vpop.xlane.xlu0 %100
    %v102 = vrot.slane %v101, 4
    %v103 = vadd.f32 %v101, %v102
    %v104 = vrot.slane %v103, 2
    %v105 = vadd.f32 %v103, %v104
    %v106 = vrot.slane %v105, 1
    %v107 = vadd.f32 %v105, %v106
    %s108 = vtos %v107
    %s109 = sadd.f32 %s97, %s108
    %s110 = scalar_lea.smem [#allocation2], 1
    %111 = sst [smem:[%s110]] %s109
    // Predicated region
    $region14: #{tpu_custom_call.1} parent=1 // pred_check
      %p112 = pneg %p12
    $region15: #{tpu_custom_call.1} parent=1 // pred_check_branch
      %114 = sbr.rel (%p112) target = $region17
    $region16: #{tpu_custom_call.1} parent=1 // pred_region
      %s115 = sld [smem:[#allocation2]]
      %s116 = smul.f32 %s115, 0.1
      %s117 = sld [smem:[#allocation2 + $0x1]]
      %s118 = sadd.f32 %s116, %s117
      %s119 = smul.f32 %s118, 0.125
      %s120 = scalar_lea.smem [#allocation3], 0
      %121 = sst [smem:[%s120]] %s119
    $region17: #{tpu_custom_call.1} parent=1 // pred_fallthru
      _
    // Predicated region
    $region18: #{tpu_custom_call.1} parent=1 // pred_check
      _
    $region19: #{tpu_custom_call.1} parent=1 // pred_check_branch
      %123 = sbr.rel (0) target = $region21
    $region20: #{tpu_custom_call.1} parent=1 // pred_region
      %125 = vsyncadd [#allocation4], 0
      %s127 = sshll.u32 %s2, 4
      %s128 = int_to_ptr.hbm [resolvable:$true] %s127
      %130 = dma.smem_to_hbm [#allocation3], 16, %s128, [#allocation4]
    $region21: #{tpu_custom_call.1} parent=1 // pred_fallthru
      _
    // Predicated region
    $region22: #{tpu_custom_call.1} parent=1 // pred_check
      _
    $region23: #{tpu_custom_call.1} parent=1 // pred_check_branch
      %132 = sbr.rel (0) target = $region25
    $region24: #{tpu_custom_call.1} parent=1 // pred_region
      %134 = dma.done [#allocation4], 16
    $region25: #{tpu_custom_call.1} parent=1 // pred_fallthru
      _
    %135 = sfence
    %136 = vsyncpa [#allocation4], 1

</llo_original>
